<compile_context>
chip_gen: v6e
topology: v6e:2x2x1
jax: 0.10.0
libtpu: 0.0.40
codegen_flags: <defaults>
</compile_context>

<pallas_src>
import functools

import jax
import jax.numpy as jnp
from jax.experimental import pallas as pl
from jax.experimental.pallas import tpu as pltpu


_PALLAS_MIN_BYTES = 4 * 1024 * 1024  # below this, fused jnp.concatenate wins


def _sublane_pack(dtype):
    # rows per packed sublane group: 8 for f32, 16 for bf16, 32 for int8
    return max(1, 32 // jnp.dtype(dtype).itemsize)


def _round_up(x, m):
    return ((x + m - 1) // m) * m


def _core_chunks(n_rows, core, num_cores, chunk_rows, pack):
    """Static (trace-time) list of (start, rows) chunks this core copies."""
    if num_cores > 1:
        per_core = _round_up(-(-n_rows // num_cores), pack)
    else:
        per_core = n_rows
    start = min(core * per_core, n_rows)
    end = min(start + per_core, n_rows)
    chunks = []
    r = start
    while r < end:
        rows = min(chunk_rows, end - r)
        chunks.append((r, rows))
        r += rows
    return chunks


def _build_plans(n_users, n_items, num_cores, chunk_rows, pack):
    """Per-core static DMA plan: list of (table_id, src_row, dst_row, rows)."""
    plans = []
    for c in range(num_cores):
        plan = []
        for (s, r) in _core_chunks(n_users, c, num_cores, chunk_rows, pack):
            plan.append((0, s, s, r))                 # users -> rows [0, n_users)
        for (s, r) in _core_chunks(n_items, c, num_cores, chunk_rows, pack):
            plan.append((1, s, n_users + s, r))       # items -> rows [n_users, ...)
        plans.append(plan)
    return plans


def _concat_kernel(u_ref, it_ref, out_ref, sems, *, plans):
    """Chunked HBM->HBM DMAs; each grid program copies its statically assigned rows."""
    core = pl.program_id(0)
    for c, plan in enumerate(plans):       # static unroll over cores

        @pl.when(core == c)
        def _(plan=plan):
            copies = []
            # Start every chunk DMA back-to-back (multiple copies in flight).
            for k, (tbl, src, dst, rows) in enumerate(plan):
                src_ref = u_ref if tbl == 0 else it_ref
                cp = pltpu.make_async_copy(
                    src_ref.at[pl.ds(src, rows), :],
                    out_ref.at[pl.ds(dst, rows), :],
                    sems.at[k],
                )
                cp.start()
                copies.append(cp)
            # Then wait on all of them.
            for cp in copies:
                cp.wait()


def bprmf_forward(user_emb_weight, item_emb_weight, *,
                  force_pallas=False,
                  num_cores=None,
                  target_chunk_bytes=2 << 20,
                  max_chunks_per_table=16):
    """BPRMF.forward(): concat the two embedding tables along axis 0."""
    n_users, emb_size = user_emb_weight.shape
    n_items, emb_size_i = item_emb_weight.shape
    assert emb_size == emb_size_i, "embedding widths must match"
    assert user_emb_weight.dtype == item_emb_weight.dtype, "dtypes must match"

    dtype = user_emb_weight.dtype
    itemsize = jnp.dtype(dtype).itemsize
    total_rows = n_users + n_items
    total_bytes = total_rows * emb_size * itemsize

    # Tiny tables: native concat fuses with consumers and skips the custom
    # call + DMA setup cost.
    if not force_pallas and total_bytes < _PALLAS_MIN_BYTES:
        return jnp.concatenate([user_emb_weight, item_emb_weight], axis=0)

    pack = _sublane_pack(dtype)

    if num_cores is None:
        # v7x exposes 2 TensorCores per chip; split the copy across both.
        try:
            num_cores = max(1, min(int(getattr(jax.devices()[0], "num_cores", 1)), 2))
        except Exception:  # pragma: no cover - conservative fallback
            num_cores = 1

    # Chunk size: ~target_chunk_bytes per DMA, rows a multiple of the sublane
    # pack, and at most max_chunks_per_table chunks per (table, core).
    row_bytes = emb_size * itemsize
    rows_per_core = max(n_users, n_items)
    if num_cores > 1:
        rows_per_core = _round_up(-(-rows_per_core // num_cores), pack)
    min_chunk_rows = _round_up(max(1, -(-rows_per_core // max_chunks_per_table)), pack)
    tgt_chunk_rows = (target_chunk_bytes // max(row_bytes, 1)) // pack * pack
    chunk_rows = max(pack, tgt_chunk_rows, min_chunk_rows)

    plans = _build_plans(n_users, n_items, num_cores, chunk_rows, pack)
    num_sems = max(1, max((len(p) for p in plans), default=1))

    kernel = functools.partial(_concat_kernel, plans=plans)

    # Pure copy: read every element once, write it once.
    bytes_accessed = 2 * total_bytes

    return pl.pallas_call(
        kernel,
        out_shape=jax.ShapeDtypeStruct((total_rows, emb_size), dtype),
        grid_spec=pltpu.PrefetchScalarGridSpec(
            num_scalar_prefetch=0,
            grid=(num_cores,),
            # Raw HBM refs, no VMEM staging.
            in_specs=[pl.BlockSpec(memory_space=pl.ANY),
                      pl.BlockSpec(memory_space=pl.ANY)],
            out_specs=pl.BlockSpec(memory_space=pl.ANY),
            scratch_shapes=[pltpu.SemaphoreType.DMA((num_sems,))],
        ),
        compiler_params=pltpu.CompilerParams(
            dimension_semantics=("parallel",)),
        cost_estimate=pl.CostEstimate(
            flops=0, transcendentals=0, bytes_accessed=bytes_accessed),
    )(user_emb_weight, item_emb_weight)


def split_emb(embeddings, n_users, n_items):
    """Plain-JAX glue mirroring BPRMF.split_emb (no compute)."""
    return embeddings[:n_users], embeddings[n_users:n_users + n_items]


# TODO(synk): bpr_loss / get_embedding are training-time helpers outside
# forward(); they are trivial gather/reduce ops best left to XLA, not Pallas.


if __name__ == "__main__":
    # Small shapes consistent with the module.  n_users is a multiple of the
    # f32 sublane pack (8) so the item-table destination offset is aligned.
    n_users, n_items, emb_size = 24, 40, 32

    key = jax.random.PRNGKey(0)
    ku, ki = jax.random.split(key)
    # Deterministic init, same distribution as nn.init.normal_(std=0.01)
    # with user_feat = item_feat = None.
    user_w = (0.01 * jax.random.normal(ku, (n_users, emb_size))).astype(jnp.float32)
    item_w = (0.01 * jax.random.normal(ki, (n_items, emb_size))).astype(jnp.float32)

    ref = jnp.concatenate([user_w, item_w], axis=0)

    # Exercise the Pallas chunked-DMA path: tiny chunk size forces several
    # in-flight DMAs, and num_cores=2 covers the per-core split branch
    # (correct on single-TC chips too; the grid just iterates).
    all_emb = bprmf_forward(user_w, item_w, force_pallas=True,
                            num_cores=2, target_chunk_bytes=1024)
    all_emb = jax.block_until_ready(all_emb)

    assert all_emb.shape == (n_users + n_items, emb_size)
    assert all_emb.dtype == jnp.float32
    assert bool(jnp.array_equal(all_emb, ref)), "pallas concat mismatch vs reference"

    # Auto dispatch: these tables are tiny, so this takes the fused jnp path.
    all_emb_auto = jax.block_until_ready(bprmf_forward(user_w, item_w))
    assert bool(jnp.array_equal(all_emb_auto, ref))

    # Glue method behaves as expected (pure copy -> bit exact).
    u, it = split_emb(all_emb, n_users, n_items)
    assert u.shape == (n_users, emb_size) and it.shape == (n_items, emb_size)
    assert bool(jnp.array_equal(u, user_w)) and bool(jnp.array_equal(it, item_w))

    print("KERNEL_OK")
</pallas_src>

<mosaic_0001>
module attributes {stable_mosaic.version = 11 : i64} {
  func.func @_concat_kernel(%arg0: i32, %arg1: memref<24x32xf32, #tpu.memory_space<any>>, %arg2: memref<40x32xf32, #tpu.memory_space<any>>, %arg3: memref<64x32xf32, #tpu.memory_space<any>>, %arg4: memref<5x!tpu.dma_semaphore, #tpu.memory_space<semaphore_mem>>) attributes {dimension_semantics = [#tpu.dimension_semantics<parallel>], iteration_bounds = array<i64: 2>, scalar_prefetch = 0 : i64, scratch_operands = 1 : i64, tpu.core_type = #tpu.core_type<tc>, window_params = [{}, {}, {}]} {
    %c0_i32 = arith.constant 0 : i32
    %0 = arith.cmpi eq, %arg0, %c0_i32 : i32
    %1 = arith.extui %0 : i1 to i32
    %c0_i32_0 = arith.constant 0 : i32
    %2 = arith.cmpi ne, %1, %c0_i32_0 : i32
    scf.if %2 {
      %c0_i32_2 = arith.constant 0 : i32
      %c0_i32_3 = arith.constant 0 : i32
      %c0_i32_4 = arith.constant 0 : i32
      %6 = tpu.memref_slice %arg1[%c0_i32_3, %c0_i32_4] : memref<24x32xf32, #tpu.memory_space<any>> -> memref<8x32xf32, #tpu.memory_space<any>>
      %c0_i32_5 = arith.constant 0 : i32
      %c0_i32_6 = arith.constant 0 : i32
      %7 = tpu.memref_slice %arg3[%c0_i32_5, %c0_i32_6] : memref<64x32xf32, #tpu.memory_space<any>> -> memref<8x32xf32, #tpu.memory_space<any>>
      %8 = tpu.memref_slice %arg4[%c0_i32_2] : memref<5x!tpu.dma_semaphore, #tpu.memory_space<semaphore_mem>> -> memref<1x!tpu.dma_semaphore, #tpu.memory_space<semaphore_mem>>
      %9 = tpu.memref_squeeze %8 : memref<1x!tpu.dma_semaphore, #tpu.memory_space<semaphore_mem>> -> memref<!tpu.dma_semaphore, #tpu.memory_space<semaphore_mem>>
      tpu.enqueue_dma source(%6 : memref<8x32xf32, #tpu.memory_space<any>>) target(%7 : memref<8x32xf32, #tpu.memory_space<any>>) target_semaphore(%9 : memref<!tpu.dma_semaphore, #tpu.memory_space<semaphore_mem>>)
      %c1_i32_7 = arith.constant 1 : i32
      %c8_i32 = arith.constant 8 : i32
      %c0_i32_8 = arith.constant 0 : i32
      %10 = tpu.memref_slice %arg1[%c8_i32, %c0_i32_8] : memref<24x32xf32, #tpu.memory_space<any>> -> memref<8x32xf32, #tpu.memory_space<any>>
      %c8_i32_9 = arith.constant 8 : i32
      %c0_i32_10 = arith.constant 0 : i32
      %11 = tpu.memref_slice %arg3[%c8_i32_9, %c0_i32_10] : memref<64x32xf32, #tpu.memory_space<any>> -> memref<8x32xf32, #tpu.memory_space<any>>
      %12 = tpu.memref_slice %arg4[%c1_i32_7] : memref<5x!tpu.dma_semaphore, #tpu.memory_space<semaphore_mem>> -> memref<1x!tpu.dma_semaphore, #tpu.memory_space<semaphore_mem>>
      %13 = tpu.memref_squeeze %12 : memref<1x!tpu.dma_semaphore, #tpu.memory_space<semaphore_mem>> -> memref<!tpu.dma_semaphore, #tpu.memory_space<semaphore_mem>>
      tpu.enqueue_dma source(%10 : memref<8x32xf32, #tpu.memory_space<any>>) target(%11 : memref<8x32xf32, #tpu.memory_space<any>>) target_semaphore(%13 : memref<!tpu.dma_semaphore, #tpu.memory_space<semaphore_mem>>)
      %c2_i32 = arith.constant 2 : i32
      %c0_i32_11 = arith.constant 0 : i32
      %c0_i32_12 = arith.constant 0 : i32
      %14 = tpu.memref_slice %arg2[%c0_i32_11, %c0_i32_12] : memref<40x32xf32, #tpu.memory_space<any>> -> memref<8x32xf32, #tpu.memory_space<any>>
      %c24_i32 = arith.constant 24 : i32
      %c0_i32_13 = arith.constant 0 : i32
      %15 = tpu.memref_slice %arg3[%c24_i32, %c0_i32_13] : memref<64x32xf32, #tpu.memory_space<any>> -> memref<8x32xf32, #tpu.memory_space<any>>
      %16 = tpu.memref_slice %arg4[%c2_i32] : memref<5x!tpu.dma_semaphore, #tpu.memory_space<semaphore_mem>> -> memref<1x!tpu.dma_semaphore, #tpu.memory_space<semaphore_mem>>
      %17 = tpu.memref_squeeze %16 : memref<1x!tpu.dma_semaphore, #tpu.memory_space<semaphore_mem>> -> memref<!tpu.dma_semaphore, #tpu.memory_space<semaphore_mem>>
      tpu.enqueue_dma source(%14 : memref<8x32xf32, #tpu.memory_space<any>>) target(%15 : memref<8x32xf32, #tpu.memory_space<any>>) target_semaphore(%17 : memref<!tpu.dma_semaphore, #tpu.memory_space<semaphore_mem>>)
      %c3_i32 = arith.constant 3 : i32
      %c8_i32_14 = arith.constant 8 : i32
      %c0_i32_15 = arith.constant 0 : i32
      %18 = tpu.memref_slice %arg2[%c8_i32_14, %c0_i32_15] : memref<40x32xf32, #tpu.memory_space<any>> -> memref<8x32xf32, #tpu.memory_space<any>>
      %c32_i32 = arith.constant 32 : i32
      %c0_i32_16 = arith.constant 0 : i32
      %19 = tpu.memref_slice %arg3[%c32_i32, %c0_i32_16] : memref<64x32xf32, #tpu.memory_space<any>> -> memref<8x32xf32, #tpu.memory_space<any>>
      %20 = tpu.memref_slice %arg4[%c3_i32] : memref<5x!tpu.dma_semaphore, #tpu.memory_space<semaphore_mem>> -> memref<1x!tpu.dma_semaphore, #tpu.memory_space<semaphore_mem>>
      %21 = tpu.memref_squeeze %20 : memref<1x!tpu.dma_semaphore, #tpu.memory_space<semaphore_mem>> -> memref<!tpu.dma_semaphore, #tpu.memory_space<semaphore_mem>>
      tpu.enqueue_dma source(%18 : memref<8x32xf32, #tpu.memory_space<any>>) target(%19 : memref<8x32xf32, #tpu.memory_space<any>>) target_semaphore(%21 : memref<!tpu.dma_semaphore, #tpu.memory_space<semaphore_mem>>)
      %c4_i32 = arith.constant 4 : i32
      %c16_i32 = arith.constant 16 : i32
      %c0_i32_17 = arith.constant 0 : i32
      %22 = tpu.memref_slice %arg2[%c16_i32, %c0_i32_17] : memref<40x32xf32, #tpu.memory_space<any>> -> memref<8x32xf32, #tpu.memory_space<any>>
      %c40_i32 = arith.constant 40 : i32
      %c0_i32_18 = arith.constant 0 : i32
      %23 = tpu.memref_slice %arg3[%c40_i32, %c0_i32_18] : memref<64x32xf32, #tpu.memory_space<any>> -> memref<8x32xf32, #tpu.memory_space<any>>
      %24 = tpu.memref_slice %arg4[%c4_i32] : memref<5x!tpu.dma_semaphore, #tpu.memory_space<semaphore_mem>> -> memref<1x!tpu.dma_semaphore, #tpu.memory_space<semaphore_mem>>
      %25 = tpu.memref_squeeze %24 : memref<1x!tpu.dma_semaphore, #tpu.memory_space<semaphore_mem>> -> memref<!tpu.dma_semaphore, #tpu.memory_space<semaphore_mem>>
      tpu.enqueue_dma source(%22 : memref<8x32xf32, #tpu.memory_space<any>>) target(%23 : memref<8x32xf32, #tpu.memory_space<any>>) target_semaphore(%25 : memref<!tpu.dma_semaphore, #tpu.memory_space<semaphore_mem>>)
      %c0_i32_19 = arith.constant 0 : i32
      %c0_i32_20 = arith.constant 0 : i32
      %c0_i32_21 = arith.constant 0 : i32
      %26 = tpu.memref_slice %arg1[%c0_i32_20, %c0_i32_21] : memref<24x32xf32, #tpu.memory_space<any>> -> memref<8x32xf32, #tpu.memory_space<any>>
      %c0_i32_22 = arith.constant 0 : i32
      %c0_i32_23 = arith.constant 0 : i32
      %27 = tpu.memref_slice %arg3[%c0_i32_22, %c0_i32_23] : memref<64x32xf32, #tpu.memory_space<any>> -> memref<8x32xf32, #tpu.memory_space<any>>
      %28 = tpu.memref_slice %arg4[%c0_i32_19] : memref<5x!tpu.dma_semaphore, #tpu.memory_space<semaphore_mem>> -> memref<1x!tpu.dma_semaphore, #tpu.memory_space<semaphore_mem>>
      %29 = tpu.memref_squeeze %28 : memref<1x!tpu.dma_semaphore, #tpu.memory_space<semaphore_mem>> -> memref<!tpu.dma_semaphore, #tpu.memory_space<semaphore_mem>>
      tpu.wait_dma2 semaphore(%29 : memref<!tpu.dma_semaphore, #tpu.memory_space<semaphore_mem>>) src(%26 : memref<8x32xf32, #tpu.memory_space<any>>) dst(%27 : memref<8x32xf32, #tpu.memory_space<any>>)
      %c1_i32_24 = arith.constant 1 : i32
      %c8_i32_25 = arith.constant 8 : i32
      %c0_i32_26 = arith.constant 0 : i32
      %30 = tpu.memref_slice %arg1[%c8_i32_25, %c0_i32_26] : memref<24x32xf32, #tpu.memory_space<any>> -> memref<8x32xf32, #tpu.memory_space<any>>
      %c8_i32_27 = arith.constant 8 : i32
      %c0_i32_28 = arith.constant 0 : i32
      %31 = tpu.memref_slice %arg3[%c8_i32_27, %c0_i32_28] : memref<64x32xf32, #tpu.memory_space<any>> -> memref<8x32xf32, #tpu.memory_space<any>>
      %32 = tpu.memref_slice %arg4[%c1_i32_24] : memref<5x!tpu.dma_semaphore, #tpu.memory_space<semaphore_mem>> -> memref<1x!tpu.dma_semaphore, #tpu.memory_space<semaphore_mem>>
      %33 = tpu.memref_squeeze %32 : memref<1x!tpu.dma_semaphore, #tpu.memory_space<semaphore_mem>> -> memref<!tpu.dma_semaphore, #tpu.memory_space<semaphore_mem>>
      tpu.wait_dma2 semaphore(%33 : memref<!tpu.dma_semaphore, #tpu.memory_space<semaphore_mem>>) src(%30 : memref<8x32xf32, #tpu.memory_space<any>>) dst(%31 : memref<8x32xf32, #tpu.memory_space<any>>)
      %c2_i32_29 = arith.constant 2 : i32
      %c0_i32_30 = arith.constant 0 : i32
      %c0_i32_31 = arith.constant 0 : i32
      %34 = tpu.memref_slice %arg2[%c0_i32_30, %c0_i32_31] : memref<40x32xf32, #tpu.memory_space<any>> -> memref<8x32xf32, #tpu.memory_space<any>>
      %c24_i32_32 = arith.constant 24 : i32
      %c0_i32_33 = arith.constant 0 : i32
      %35 = tpu.memref_slice %arg3[%c24_i32_32, %c0_i32_33] : memref<64x32xf32, #tpu.memory_space<any>> -> memref<8x32xf32, #tpu.memory_space<any>>
      %36 = tpu.memref_slice %arg4[%c2_i32_29] : memref<5x!tpu.dma_semaphore, #tpu.memory_space<semaphore_mem>> -> memref<1x!tpu.dma_semaphore, #tpu.memory_space<semaphore_mem>>
      %37 = tpu.memref_squeeze %36 : memref<1x!tpu.dma_semaphore, #tpu.memory_space<semaphore_mem>> -> memref<!tpu.dma_semaphore, #tpu.memory_space<semaphore_mem>>
      tpu.wait_dma2 semaphore(%37 : memref<!tpu.dma_semaphore, #tpu.memory_space<semaphore_mem>>) src(%34 : memref<8x32xf32, #tpu.memory_space<any>>) dst(%35 : memref<8x32xf32, #tpu.memory_space<any>>)
      %c3_i32_34 = arith.constant 3 : i32
      %c8_i32_35 = arith.constant 8 : i32
      %c0_i32_36 = arith.constant 0 : i32
      %38 = tpu.memref_slice %arg2[%c8_i32_35, %c0_i32_36] : memref<40x32xf32, #tpu.memory_space<any>> -> memref<8x32xf32, #tpu.memory_space<any>>
      %c32_i32_37 = arith.constant 32 : i32
      %c0_i32_38 = arith.constant 0 : i32
      %39 = tpu.memref_slice %arg3[%c32_i32_37, %c0_i32_38] : memref<64x32xf32, #tpu.memory_space<any>> -> memref<8x32xf32, #tpu.memory_space<any>>
      %40 = tpu.memref_slice %arg4[%c3_i32_34] : memref<5x!tpu.dma_semaphore, #tpu.memory_space<semaphore_mem>> -> memref<1x!tpu.dma_semaphore, #tpu.memory_space<semaphore_mem>>
      %41 = tpu.memref_squeeze %40 : memref<1x!tpu.dma_semaphore, #tpu.memory_space<semaphore_mem>> -> memref<!tpu.dma_semaphore, #tpu.memory_space<semaphore_mem>>
      tpu.wait_dma2 semaphore(%41 : memref<!tpu.dma_semaphore, #tpu.memory_space<semaphore_mem>>) src(%38 : memref<8x32xf32, #tpu.memory_space<any>>) dst(%39 : memref<8x32xf32, #tpu.memory_space<any>>)
      %c4_i32_39 = arith.constant 4 : i32
      %c16_i32_40 = arith.constant 16 : i32
      %c0_i32_41 = arith.constant 0 : i32
      %42 = tpu.memref_slice %arg2[%c16_i32_40, %c0_i32_41] : memref<40x32xf32, #tpu.memory_space<any>> -> memref<8x32xf32, #tpu.memory_space<any>>
      %c40_i32_42 = arith.constant 40 : i32
      %c0_i32_43 = arith.constant 0 : i32
      %43 = tpu.memref_slice %arg3[%c40_i32_42, %c0_i32_43] : memref<64x32xf32, #tpu.memory_space<any>> -> memref<8x32xf32, #tpu.memory_space<any>>
      %44 = tpu.memref_slice %arg4[%c4_i32_39] : memref<5x!tpu.dma_semaphore, #tpu.memory_space<semaphore_mem>> -> memref<1x!tpu.dma_semaphore, #tpu.memory_space<semaphore_mem>>
      %45 = tpu.memref_squeeze %44 : memref<1x!tpu.dma_semaphore, #tpu.memory_space<semaphore_mem>> -> memref<!tpu.dma_semaphore, #tpu.memory_space<semaphore_mem>>
      tpu.wait_dma2 semaphore(%45 : memref<!tpu.dma_semaphore, #tpu.memory_space<semaphore_mem>>) src(%42 : memref<8x32xf32, #tpu.memory_space<any>>) dst(%43 : memref<8x32xf32, #tpu.memory_space<any>>)
    } else {
    }
    %c1_i32 = arith.constant 1 : i32
    %3 = arith.cmpi eq, %arg0, %c1_i32 : i32
    %4 = arith.extui %3 : i1 to i32
    %c0_i32_1 = arith.constant 0 : i32
    %5 = arith.cmpi ne, %4, %c0_i32_1 : i32
    scf.if %5 {
      %c0_i32_2 = arith.constant 0 : i32
      %c16_i32 = arith.constant 16 : i32
      %c0_i32_3 = arith.constant 0 : i32
      %6 = tpu.memref_slice %arg1[%c16_i32, %c0_i32_3] : memref<24x32xf32, #tpu.memory_space<any>> -> memref<8x32xf32, #tpu.memory_space<any>>
      %c16_i32_4 = arith.constant 16 : i32
      %c0_i32_5 = arith.constant 0 : i32
      %7 = tpu.memref_slice %arg3[%c16_i32_4, %c0_i32_5] : memref<64x32xf32, #tpu.memory_space<any>> -> memref<8x32xf32, #tpu.memory_space<any>>
      %8 = tpu.memref_slice %arg4[%c0_i32_2] : memref<5x!tpu.dma_semaphore, #tpu.memory_space<semaphore_mem>> -> memref<1x!tpu.dma_semaphore, #tpu.memory_space<semaphore_mem>>
      %9 = tpu.memref_squeeze %8 : memref<1x!tpu.dma_semaphore, #tpu.memory_space<semaphore_mem>> -> memref<!tpu.dma_semaphore, #tpu.memory_space<semaphore_mem>>
      tpu.enqueue_dma source(%6 : memref<8x32xf32, #tpu.memory_space<any>>) target(%7 : memref<8x32xf32, #tpu.memory_space<any>>) target_semaphore(%9 : memref<!tpu.dma_semaphore, #tpu.memory_space<semaphore_mem>>)
      %c1_i32_6 = arith.constant 1 : i32
      %c24_i32 = arith.constant 24 : i32
      %c0_i32_7 = arith.constant 0 : i32
      %10 = tpu.memref_slice %arg2[%c24_i32, %c0_i32_7] : memref<40x32xf32, #tpu.memory_space<any>> -> memref<8x32xf32, #tpu.memory_space<any>>
      %c48_i32 = arith.constant 48 : i32
      %c0_i32_8 = arith.constant 0 : i32
      %11 = tpu.memref_slice %arg3[%c48_i32, %c0_i32_8] : memref<64x32xf32, #tpu.memory_space<any>> -> memref<8x32xf32, #tpu.memory_space<any>>
      %12 = tpu.memref_slice %arg4[%c1_i32_6] : memref<5x!tpu.dma_semaphore, #tpu.memory_space<semaphore_mem>> -> memref<1x!tpu.dma_semaphore, #tpu.memory_space<semaphore_mem>>
      %13 = tpu.memref_squeeze %12 : memref<1x!tpu.dma_semaphore, #tpu.memory_space<semaphore_mem>> -> memref<!tpu.dma_semaphore, #tpu.memory_space<semaphore_mem>>
      tpu.enqueue_dma source(%10 : memref<8x32xf32, #tpu.memory_space<any>>) target(%11 : memref<8x32xf32, #tpu.memory_space<any>>) target_semaphore(%13 : memref<!tpu.dma_semaphore, #tpu.memory_space<semaphore_mem>>)
      %c2_i32 = arith.constant 2 : i32
      %c32_i32 = arith.constant 32 : i32
      %c0_i32_9 = arith.constant 0 : i32
      %14 = tpu.memref_slice %arg2[%c32_i32, %c0_i32_9] : memref<40x32xf32, #tpu.memory_space<any>> -> memref<8x32xf32, #tpu.memory_space<any>>
      %c56_i32 = arith.constant 56 : i32
      %c0_i32_10 = arith.constant 0 : i32
      %15 = tpu.memref_slice %arg3[%c56_i32, %c0_i32_10] : memref<64x32xf32, #tpu.memory_space<any>> -> memref<8x32xf32, #tpu.memory_space<any>>
      %16 = tpu.memref_slice %arg4[%c2_i32] : memref<5x!tpu.dma_semaphore, #tpu.memory_space<semaphore_mem>> -> memref<1x!tpu.dma_semaphore, #tpu.memory_space<semaphore_mem>>
      %17 = tpu.memref_squeeze %16 : memref<1x!tpu.dma_semaphore, #tpu.memory_space<semaphore_mem>> -> memref<!tpu.dma_semaphore, #tpu.memory_space<semaphore_mem>>
      tpu.enqueue_dma source(%14 : memref<8x32xf32, #tpu.memory_space<any>>) target(%15 : memref<8x32xf32, #tpu.memory_space<any>>) target_semaphore(%17 : memref<!tpu.dma_semaphore, #tpu.memory_space<semaphore_mem>>)
      %c0_i32_11 = arith.constant 0 : i32
      %c16_i32_12 = arith.constant 16 : i32
      %c0_i32_13 = arith.constant 0 : i32
      %18 = tpu.memref_slice %arg1[%c16_i32_12, %c0_i32_13] : memref<24x32xf32, #tpu.memory_space<any>> -> memref<8x32xf32, #tpu.memory_space<any>>
      %c16_i32_14 = arith.constant 16 : i32
      %c0_i32_15 = arith.constant 0 : i32
      %19 = tpu.memref_slice %arg3[%c16_i32_14, %c0_i32_15] : memref<64x32xf32, #tpu.memory_space<any>> -> memref<8x32xf32, #tpu.memory_space<any>>
      %20 = tpu.memref_slice %arg4[%c0_i32_11] : memref<5x!tpu.dma_semaphore, #tpu.memory_space<semaphore_mem>> -> memref<1x!tpu.dma_semaphore, #tpu.memory_space<semaphore_mem>>
      %21 = tpu.memref_squeeze %20 : memref<1x!tpu.dma_semaphore, #tpu.memory_space<semaphore_mem>> -> memref<!tpu.dma_semaphore, #tpu.memory_space<semaphore_mem>>
      tpu.wait_dma2 semaphore(%21 : memref<!tpu.dma_semaphore, #tpu.memory_space<semaphore_mem>>) src(%18 : memref<8x32xf32, #tpu.memory_space<any>>) dst(%19 : memref<8x32xf32, #tpu.memory_space<any>>)
      %c1_i32_16 = arith.constant 1 : i32
      %c24_i32_17 = arith.constant 24 : i32
      %c0_i32_18 = arith.constant 0 : i32
      %22 = tpu.memref_slice %arg2[%c24_i32_17, %c0_i32_18] : memref<40x32xf32, #tpu.memory_space<any>> -> memref<8x32xf32, #tpu.memory_space<any>>
      %c48_i32_19 = arith.constant 48 : i32
      %c0_i32_20 = arith.constant 0 : i32
      %23 = tpu.memref_slice %arg3[%c48_i32_19, %c0_i32_20] : memref<64x32xf32, #tpu.memory_space<any>> -> memref<8x32xf32, #tpu.memory_space<any>>
      %24 = tpu.memref_slice %arg4[%c1_i32_16] : memref<5x!tpu.dma_semaphore, #tpu.memory_space<semaphore_mem>> -> memref<1x!tpu.dma_semaphore, #tpu.memory_space<semaphore_mem>>
      %25 = tpu.memref_squeeze %24 : memref<1x!tpu.dma_semaphore, #tpu.memory_space<semaphore_mem>> -> memref<!tpu.dma_semaphore, #tpu.memory_space<semaphore_mem>>
      tpu.wait_dma2 semaphore(%25 : memref<!tpu.dma_semaphore, #tpu.memory_space<semaphore_mem>>) src(%22 : memref<8x32xf32, #tpu.memory_space<any>>) dst(%23 : memref<8x32xf32, #tpu.memory_space<any>>)
      %c2_i32_21 = arith.constant 2 : i32
      %c32_i32_22 = arith.constant 32 : i32
      %c0_i32_23 = arith.constant 0 : i32
      %26 = tpu.memref_slice %arg2[%c32_i32_22, %c0_i32_23] : memref<40x32xf32, #tpu.memory_space<any>> -> memref<8x32xf32, #tpu.memory_space<any>>
      %c56_i32_24 = arith.constant 56 : i32
      %c0_i32_25 = arith.constant 0 : i32
      %27 = tpu.memref_slice %arg3[%c56_i32_24, %c0_i32_25] : memref<64x32xf32, #tpu.memory_space<any>> -> memref<8x32xf32, #tpu.memory_space<any>>
      %28 = tpu.memref_slice %arg4[%c2_i32_21] : memref<5x!tpu.dma_semaphore, #tpu.memory_space<semaphore_mem>> -> memref<1x!tpu.dma_semaphore, #tpu.memory_space<semaphore_mem>>
      %29 = tpu.memref_squeeze %28 : memref<1x!tpu.dma_semaphore, #tpu.memory_space<semaphore_mem>> -> memref<!tpu.dma_semaphore, #tpu.memory_space<semaphore_mem>>
      tpu.wait_dma2 semaphore(%29 : memref<!tpu.dma_semaphore, #tpu.memory_space<semaphore_mem>>) src(%26 : memref<8x32xf32, #tpu.memory_space<any>>) dst(%27 : memref<8x32xf32, #tpu.memory_space<any>>)
    } else {
    }
    return
  }
}

</mosaic_0001>

<llo_original>
// kernel: tpu_custom_call.1
$region0: #{tpu_custom_call.1}
  #allocation0 [shape = 'u32[]', space=smem, size = 0x4, offset = 0x4, fixed_abs, tag = 'smem constant byte address 0x4 - core index']
  #allocation1 [shape = 'u32[144,128]{1,0:T(1,128)}', space=vmem, size = 0x12000, scoped, tag = 'internal scratch']
  #allocation2 [shape = 's32[5]{0}', space=sflag, size = 0x14, scoped, tag = 'scratch operand']
  #allocation3 [shape = 's32[]', space=sflag, size = 0x4, offset = 0, fixed_abs, tag = 'sflag constant byte address 0x0 - dummy sync flag']
  #allocation4 [shape = 's32[]', space=sflag, size = 0x4, offset = 0, fixed_abs, tag = 'sflag constant byte address 0x0 - dummy sync flag']
  #allocation5 [shape = 's32[]', space=sflag, size = 0x4, offset = 0, fixed_abs, tag = 'sflag constant byte address 0x0 - dummy sync flag']
  #allocation6 [shape = 's32[]', space=sflag, size = 0x4, offset = 0, fixed_abs, tag = 'sflag constant byte address 0x0 - dummy sync flag']
  #allocation7 [shape = 's32[]', space=sflag, size = 0x4, offset = 0, fixed_abs, tag = 'sflag constant byte address 0x0 - dummy sync flag']
  #allocation8 [shape = 's32[]', space=sflag, size = 0x4, offset = 0, fixed_abs, tag = 'sflag constant byte address 0x0 - dummy sync flag']
  #allocation9 [shape = 's32[]', space=sflag, size = 0x4, offset = 0, fixed_abs, tag = 'sflag constant byte address 0x0 - dummy sync flag']
  #allocation10 [shape = 's32[]', space=sflag, size = 0x4, offset = 0, fixed_abs, tag = 'sflag constant byte address 0x0 - dummy sync flag']
  %s0 = inlined_call_operand.vmem [shape: f32[24,32], index: 0, kind: input, shape index: {}]
  %s1 = inlined_call_operand.vmem [shape: f32[40,32], index: 1, kind: input, shape index: {}]
  %s2 = inlined_call_operand.vmem [shape: f32[64,32], index: 2, kind: output, shape index: {}]
  %s3 = sld [smem:[#allocation0]]
  $region289: #{tpu_custom_call.1} parent=0
    _
  %s5 = ssub.s32 1, %s3
  %s6 = scalar_select 0, %s5, %s3
  loop: start=0, step=1, limit=2
  $region2: #{tpu_custom_call.1} parent=0 // loop_pre_header
    _
  $region3: #{tpu_custom_call.1} parent=0 // loop_header
    %s8 = sphi 0, %s12
    %p9 = scmp.ge.s32.totalorder %s8, 2
  $region4: #{tpu_custom_call.1} parent=0 // loop_header_branch
    %11 = sbr.rel (%p9) target = $region8
  $region5: #{tpu_custom_call.1} parent=0 // loop_body
    %s13 = sadd.s32 %s8, 1
    %p14 = scmp.eq.s32.totalorder %s8, 0
    // Predicated region
    $region9: #{tpu_custom_call.1} parent=5 // pred_check
      %p15 = pneg %p14
    $region10: #{tpu_custom_call.1} parent=5 // pred_check_branch
      %17 = sbr.rel (%p15) target = $region12
    $region11: #{tpu_custom_call.1} parent=5 // pred_region
      %p19 = scmp.lt.u32.totalorder 8, 8
      %p20 = pneg %p19
      // Predicated region
      $region13: #{tpu_custom_call.1} parent=11 // pred_check
        _
      $region14: #{tpu_custom_call.1} parent=11 // pred_check_branch
        %22 = sbr.rel (%p19) target = $region16
      $region15: #{tpu_custom_call.1} parent=11 // pred_region
        %s38 = sand.u32 8, 7
        %p39 = scmp.eq.s32.totalorder %s38, 0
        // Predicated region
        $region28: #{tpu_custom_call.1} parent=15 // pred_check
          %p40 = pneg %p39
        $region29: #{tpu_custom_call.1} parent=15 // pred_check_branch
          %42 = sbr.rel (%p40) target = $region31
        $region30: #{tpu_custom_call.1} parent=15 // pred_region
          loop: start=0, step=1, limit=1
          $region32: #{tpu_custom_call.1} parent=30 // loop_pre_header
            _
          $region33: #{tpu_custom_call.1} parent=30 // loop_header
            %s44 = sphi 0, %s48
            %p45 = scmp.ge.s32.totalorder %s44, 1
            %s49 = sphi %s0, %s0
            %s50 = sphi %s2, %s2
          $region34: #{tpu_custom_call.1} parent=30 // loop_header_branch
            %47 = sbr.rel (%p45) target = $region38
          $region35: #{tpu_custom_call.1} parent=30 // loop_body
            %v51 = vld [vmem:[%s49] sm:$0xff]
            %52 = vst [vmem:[%s50] sm:$0xff] %v51
          $region36: #{tpu_custom_call.1} parent=30 // loop_footer
            %s48 = sadd.s32 1, %s44
          $region37: #{tpu_custom_call.1} parent=30 // loop_footer_branch
            %43 = sbr.rel target = $region33
          $region38: #{tpu_custom_call.1} parent=30 // loop_exit
            _
        $region31: #{tpu_custom_call.1} parent=15 // pred_fallthru
          _
        %p53 = pneg %p39
        // Predicated region
        $region39: #{tpu_custom_call.1} parent=15 // pred_check
          _
        $region40: #{tpu_custom_call.1} parent=15 // pred_check_branch
          %55 = sbr.rel (%p39) target = $region42
        $region41: #{tpu_custom_call.1} parent=15 // pred_region
          %s56 = sand.u32 8, 7
        $region42: #{tpu_custom_call.1} parent=15 // pred_fallthru
          _
      $region16: #{tpu_custom_call.1} parent=11 // pred_fallthru
        _
      // Predicated region
      $region17: #{tpu_custom_call.1} parent=11 // pred_check
        %p23 = pneg %p19
      $region18: #{tpu_custom_call.1} parent=11 // pred_check_branch
        %25 = sbr.rel (%p23) target = $region20
      $region19: #{tpu_custom_call.1} parent=11 // pred_region
        %s26 = sshll.u32 1, 8
        %s27 = ssub.s32 %s26, 1
        loop: start=0, step=1, limit=1
        $region21: #{tpu_custom_call.1} parent=19 // loop_pre_header
          _
        $region22: #{tpu_custom_call.1} parent=19 // loop_header
          %s29 = sphi 0, %s33
          %p30 = scmp.ge.s32.totalorder %s29, 1
          %s34 = sphi %s0, %s0
          %s35 = sphi %s2, %s2
        $region23: #{tpu_custom_call.1} parent=19 // loop_header_branch
          %32 = sbr.rel (%p30) target = $region27
        $region24: #{tpu_custom_call.1} parent=19 // loop_body
          %v36 = vld [vmem:[%s34] sm:%s27]
          %37 = vst [vmem:[%s35] sm:%s27] %v36
        $region25: #{tpu_custom_call.1} parent=19 // loop_footer
          %s33 = sadd.s32 1, %s29
        $region26: #{tpu_custom_call.1} parent=19 // loop_footer_branch
          %28 = sbr.rel target = $region22
        $region27: #{tpu_custom_call.1} parent=19 // loop_exit
          _
      $region20: #{tpu_custom_call.1} parent=11 // pred_fallthru
        _
      // Predicated region
      $region43: #{tpu_custom_call.1} parent=11 // pred_check
        _
      $region44: #{tpu_custom_call.1} parent=11 // pred_check_branch
        %59 = sbr.rel (0) target = $region46
      $region45: #{tpu_custom_call.1} parent=11 // pred_region
        %60 = vsyncadd [#allocation2], 128
      $region46: #{tpu_custom_call.1} parent=11 // pred_fallthru
        _
      %s61 = scalar_lea.vmem %s0, 8
      %s62 = scalar_lea.vmem %s2, 8
      %s63 = scalar_lea.sflag [#allocation2], 1
      %p65 = scmp.lt.u32.totalorder 8, 8
      %p66 = pneg %p65
      // Predicated region
      $region47: #{tpu_custom_call.1} parent=11 // pred_check
        _
      $region48: #{tpu_custom_call.1} parent=11 // pred_check_branch
        %68 = sbr.rel (%p65) target = $region50
      $region49: #{tpu_custom_call.1} parent=11 // pred_region
        %s84 = sand.u32 8, 7
        %p85 = scmp.eq.s32.totalorder %s84, 0
        // Predicated region
        $region62: #{tpu_custom_call.1} parent=49 // pred_check
          %p86 = pneg %p85
        $region63: #{tpu_custom_call.1} parent=49 // pred_check_branch
          %88 = sbr.rel (%p86) target = $region65
        $region64: #{tpu_custom_call.1} parent=49 // pred_region
          loop: start=0, step=1, limit=1
          $region66: #{tpu_custom_call.1} parent=64 // loop_pre_header
            _
          $region67: #{tpu_custom_call.1} parent=64 // loop_header
            %s90 = sphi 0, %s94
            %p91 = scmp.ge.s32.totalorder %s90, 1
            %s95 = sphi %s61, %s61
            %s96 = sphi %s62, %s62
          $region68: #{tpu_custom_call.1} parent=64 // loop_header_branch
            %93 = sbr.rel (%p91) target = $region72
          $region69: #{tpu_custom_call.1} parent=64 // loop_body
            %v97 = vld [vmem:[%s95] sm:$0xff]
            %98 = vst [vmem:[%s96] sm:$0xff] %v97
          $region70: #{tpu_custom_call.1} parent=64 // loop_footer
            %s94 = sadd.s32 1, %s90
          $region71: #{tpu_custom_call.1} parent=64 // loop_footer_branch
            %89 = sbr.rel target = $region67
          $region72: #{tpu_custom_call.1} parent=64 // loop_exit
            _
        $region65: #{tpu_custom_call.1} parent=49 // pred_fallthru
          _
        %p99 = pneg %p85
        // Predicated region
        $region73: #{tpu_custom_call.1} parent=49 // pred_check
          _
        $region74: #{tpu_custom_call.1} parent=49 // pred_check_branch
          %101 = sbr.rel (%p85) target = $region76
        $region75: #{tpu_custom_call.1} parent=49 // pred_region
          %s102 = sand.u32 8, 7
        $region76: #{tpu_custom_call.1} parent=49 // pred_fallthru
          _
      $region50: #{tpu_custom_call.1} parent=11 // pred_fallthru
        _
      // Predicated region
      $region51: #{tpu_custom_call.1} parent=11 // pred_check
        %p69 = pneg %p65
      $region52: #{tpu_custom_call.1} parent=11 // pred_check_branch
        %71 = sbr.rel (%p69) target = $region54
      $region53: #{tpu_custom_call.1} parent=11 // pred_region
        %s72 = sshll.u32 1, 8
        %s73 = ssub.s32 %s72, 1
        loop: start=0, step=1, limit=1
        $region55: #{tpu_custom_call.1} parent=53 // loop_pre_header
          _
        $region56: #{tpu_custom_call.1} parent=53 // loop_header
          %s75 = sphi 0, %s79
          %p76 = scmp.ge.s32.totalorder %s75, 1
          %s80 = sphi %s61, %s61
          %s81 = sphi %s62, %s62
        $region57: #{tpu_custom_call.1} parent=53 // loop_header_branch
          %78 = sbr.rel (%p76) target = $region61
        $region58: #{tpu_custom_call.1} parent=53 // loop_body
          %v82 = vld [vmem:[%s80] sm:%s73]
          %83 = vst [vmem:[%s81] sm:%s73] %v82
        $region59: #{tpu_custom_call.1} parent=53 // loop_footer
          %s79 = sadd.s32 1, %s75
        $region60: #{tpu_custom_call.1} parent=53 // loop_footer_branch
          %74 = sbr.rel target = $region56
        $region61: #{tpu_custom_call.1} parent=53 // loop_exit
          _
      $region54: #{tpu_custom_call.1} parent=11 // pred_fallthru
        _
      // Predicated region
      $region77: #{tpu_custom_call.1} parent=11 // pred_check
        _
      $region78: #{tpu_custom_call.1} parent=11 // pred_check_branch
        %105 = sbr.rel (0) target = $region80
      $region79: #{tpu_custom_call.1} parent=11 // pred_region
        %106 = vsyncadd %s63, 128
      $region80: #{tpu_custom_call.1} parent=11 // pred_fallthru
        _
      %s107 = scalar_lea.vmem %s2, 24
      %s108 = scalar_lea.sflag [#allocation2], 2
      %p110 = scmp.lt.u32.totalorder 8, 8
      %p111 = pneg %p110
      // Predicated region
      $region81: #{tpu_custom_call.1} parent=11 // pred_check
        _
      $region82: #{tpu_custom_call.1} parent=11 // pred_check_branch
        %113 = sbr.rel (%p110) target = $region84
      $region83: #{tpu_custom_call.1} parent=11 // pred_region
        %s129 = sand.u32 8, 7
        %p130 = scmp.eq.s32.totalorder %s129, 0
        // Predicated region
        $region96: #{tpu_custom_call.1} parent=83 // pred_check
          %p131 = pneg %p130
        $region97: #{tpu_custom_call.1} parent=83 // pred_check_branch
          %133 = sbr.rel (%p131) target = $region99
        $region98: #{tpu_custom_call.1} parent=83 // pred_region
          loop: start=0, step=1, limit=1
          $region100: #{tpu_custom_call.1} parent=98 // loop_pre_header
            _
          $region101: #{tpu_custom_call.1} parent=98 // loop_header
            %s135 = sphi 0, %s139
            %p136 = scmp.ge.s32.totalorder %s135, 1
            %s140 = sphi %s1, %s1
            %s141 = sphi %s107, %s107
          $region102: #{tpu_custom_call.1} parent=98 // loop_header_branch
            %138 = sbr.rel (%p136) target = $region106
          $region103: #{tpu_custom_call.1} parent=98 // loop_body
            %v142 = vld [vmem:[%s140] sm:$0xff]
            %143 = vst [vmem:[%s141] sm:$0xff] %v142
          $region104: #{tpu_custom_call.1} parent=98 // loop_footer
            %s139 = sadd.s32 1, %s135
          $region105: #{tpu_custom_call.1} parent=98 // loop_footer_branch
            %134 = sbr.rel target = $region101
          $region106: #{tpu_custom_call.1} parent=98 // loop_exit
            _
        $region99: #{tpu_custom_call.1} parent=83 // pred_fallthru
          _
        %p144 = pneg %p130
        // Predicated region
        $region107: #{tpu_custom_call.1} parent=83 // pred_check
          _
        $region108: #{tpu_custom_call.1} parent=83 // pred_check_branch
          %146 = sbr.rel (%p130) target = $region110
        $region109: #{tpu_custom_call.1} parent=83 // pred_region
          %s147 = sand.u32 8, 7
        $region110: #{tpu_custom_call.1} parent=83 // pred_fallthru
          _
      $region84: #{tpu_custom_call.1} parent=11 // pred_fallthru
        _
      // Predicated region
      $region85: #{tpu_custom_call.1} parent=11 // pred_check
        %p114 = pneg %p110
      $region86: #{tpu_custom_call.1} parent=11 // pred_check_branch
        %116 = sbr.rel (%p114) target = $region88
      $region87: #{tpu_custom_call.1} parent=11 // pred_region
        %s117 = sshll.u32 1, 8
        %s118 = ssub.s32 %s117, 1
        loop: start=0, step=1, limit=1
        $region89: #{tpu_custom_call.1} parent=87 // loop_pre_header
          _
        $region90: #{tpu_custom_call.1} parent=87 // loop_header
          %s120 = sphi 0, %s124
          %p121 = scmp.ge.s32.totalorder %s120, 1
          %s125 = sphi %s1, %s1
          %s126 = sphi %s107, %s107
        $region91: #{tpu_custom_call.1} parent=87 // loop_header_branch
          %123 = sbr.rel (%p121) target = $region95
        $region92: #{tpu_custom_call.1} parent=87 // loop_body
          %v127 = vld [vmem:[%s125] sm:%s118]
          %128 = vst [vmem:[%s126] sm:%s118] %v127
        $region93: #{tpu_custom_call.1} parent=87 // loop_footer
          %s124 = sadd.s32 1, %s120
        $region94: #{tpu_custom_call.1} parent=87 // loop_footer_branch
          %119 = sbr.rel target = $region90
        $region95: #{tpu_custom_call.1} parent=87 // loop_exit
          _
      $region88: #{tpu_custom_call.1} parent=11 // pred_fallthru
        _
      // Predicated region
      $region111: #{tpu_custom_call.1} parent=11 // pred_check
        _
      $region112: #{tpu_custom_call.1} parent=11 // pred_check_branch
        %150 = sbr.rel (0) target = $region114
      $region113: #{tpu_custom_call.1} parent=11 // pred_region
        %151 = vsyncadd %s108, 128
      $region114: #{tpu_custom_call.1} parent=11 // pred_fallthru
        _
      %s152 = scalar_lea.vmem %s1, 8
      %s153 = scalar_lea.vmem %s2, 32
      %s154 = scalar_lea.sflag [#allocation2], 3
      %p156 = scmp.lt.u32.totalorder 8, 8
      %p157 = pneg %p156
      // Predicated region
      $region115: #{tpu_custom_call.1} parent=11 // pred_check
        _
      $region116: #{tpu_custom_call.1} parent=11 // pred_check_branch
        %159 = sbr.rel (%p156) target = $region118
      $region117: #{tpu_custom_call.1} parent=11 // pred_region
        %s175 = sand.u32 8, 7
        %p176 = scmp.eq.s32.totalorder %s175, 0
        // Predicated region
        $region130: #{tpu_custom_call.1} parent=117 // pred_check
          %p177 = pneg %p176
        $region131: #{tpu_custom_call.1} parent=117 // pred_check_branch
          %179 = sbr.rel (%p177) target = $region133
        $region132: #{tpu_custom_call.1} parent=117 // pred_region
          loop: start=0, step=1, limit=1
          $region134: #{tpu_custom_call.1} parent=132 // loop_pre_header
            _
          $region135: #{tpu_custom_call.1} parent=132 // loop_header
            %s181 = sphi 0, %s185
            %p182 = scmp.ge.s32.totalorder %s181, 1
            %s186 = sphi %s152, %s152
            %s187 = sphi %s153, %s153
          $region136: #{tpu_custom_call.1} parent=132 // loop_header_branch
            %184 = sbr.rel (%p182) target = $region140
          $region137: #{tpu_custom_call.1} parent=132 // loop_body
            %v188 = vld [vmem:[%s186] sm:$0xff]
            %189 = vst [vmem:[%s187] sm:$0xff] %v188
          $region138: #{tpu_custom_call.1} parent=132 // loop_footer
            %s185 = sadd.s32 1, %s181
          $region139: #{tpu_custom_call.1} parent=132 // loop_footer_branch
            %180 = sbr.rel target = $region135
          $region140: #{tpu_custom_call.1} parent=132 // loop_exit
            _
        $region133: #{tpu_custom_call.1} parent=117 // pred_fallthru
          _
        %p190 = pneg %p176
        // Predicated region
        $region141: #{tpu_custom_call.1} parent=117 // pred_check
          _
        $region142: #{tpu_custom_call.1} parent=117 // pred_check_branch
          %192 = sbr.rel (%p176) target = $region144
        $region143: #{tpu_custom_call.1} parent=117 // pred_region
          %s193 = sand.u32 8, 7
        $region144: #{tpu_custom_call.1} parent=117 // pred_fallthru
          _
      $region118: #{tpu_custom_call.1} parent=11 // pred_fallthru
        _
      // Predicated region
      $region119: #{tpu_custom_call.1} parent=11 // pred_check
        %p160 = pneg %p156
      $region120: #{tpu_custom_call.1} parent=11 // pred_check_branch
        %162 = sbr.rel (%p160) target = $region122
      $region121: #{tpu_custom_call.1} parent=11 // pred_region
        %s163 = sshll.u32 1, 8
        %s164 = ssub.s32 %s163, 1
        loop: start=0, step=1, limit=1
        $region123: #{tpu_custom_call.1} parent=121 // loop_pre_header
          _
        $region124: #{tpu_custom_call.1} parent=121 // loop_header
          %s166 = sphi 0, %s170
          %p167 = scmp.ge.s32.totalorder %s166, 1
          %s171 = sphi %s152, %s152
          %s172 = sphi %s153, %s153
        $region125: #{tpu_custom_call.1} parent=121 // loop_header_branch
          %169 = sbr.rel (%p167) target = $region129
        $region126: #{tpu_custom_call.1} parent=121 // loop_body
          %v173 = vld [vmem:[%s171] sm:%s164]
          %174 = vst [vmem:[%s172] sm:%s164] %v173
        $region127: #{tpu_custom_call.1} parent=121 // loop_footer
          %s170 = sadd.s32 1, %s166
        $region128: #{tpu_custom_call.1} parent=121 // loop_footer_branch
          %165 = sbr.rel target = $region124
        $region129: #{tpu_custom_call.1} parent=121 // loop_exit
          _
      $region122: #{tpu_custom_call.1} parent=11 // pred_fallthru
        _
      // Predicated region
      $region145: #{tpu_custom_call.1} parent=11 // pred_check
        _
      $region146: #{tpu_custom_call.1} parent=11 // pred_check_branch
        %196 = sbr.rel (0) target = $region148
      $region147: #{tpu_custom_call.1} parent=11 // pred_region
        %197 = vsyncadd %s154, 128
      $region148: #{tpu_custom_call.1} parent=11 // pred_fallthru
        _
      %s198 = scalar_lea.vmem %s1, 16
      %s199 = scalar_lea.vmem %s2, 40
      %s200 = scalar_lea.sflag [#allocation2], 4
      %p202 = scmp.lt.u32.totalorder 8, 8
      %p203 = pneg %p202
      // Predicated region
      $region149: #{tpu_custom_call.1} parent=11 // pred_check
        _
      $region150: #{tpu_custom_call.1} parent=11 // pred_check_branch
        %205 = sbr.rel (%p202) target = $region152
      $region151: #{tpu_custom_call.1} parent=11 // pred_region
        %s221 = sand.u32 8, 7
        %p222 = scmp.eq.s32.totalorder %s221, 0
        // Predicated region
        $region164: #{tpu_custom_call.1} parent=151 // pred_check
          %p223 = pneg %p222
        $region165: #{tpu_custom_call.1} parent=151 // pred_check_branch
          %225 = sbr.rel (%p223) target = $region167
        $region166: #{tpu_custom_call.1} parent=151 // pred_region
          loop: start=0, step=1, limit=1
          $region168: #{tpu_custom_call.1} parent=166 // loop_pre_header
            _
          $region169: #{tpu_custom_call.1} parent=166 // loop_header
            %s227 = sphi 0, %s231
            %p228 = scmp.ge.s32.totalorder %s227, 1
            %s232 = sphi %s198, %s198
            %s233 = sphi %s199, %s199
          $region170: #{tpu_custom_call.1} parent=166 // loop_header_branch
            %230 = sbr.rel (%p228) target = $region174
          $region171: #{tpu_custom_call.1} parent=166 // loop_body
            %v234 = vld [vmem:[%s232] sm:$0xff]
            %235 = vst [vmem:[%s233] sm:$0xff] %v234
          $region172: #{tpu_custom_call.1} parent=166 // loop_footer
            %s231 = sadd.s32 1, %s227
          $region173: #{tpu_custom_call.1} parent=166 // loop_footer_branch
            %226 = sbr.rel target = $region169
          $region174: #{tpu_custom_call.1} parent=166 // loop_exit
            _
        $region167: #{tpu_custom_call.1} parent=151 // pred_fallthru
          _
        %p236 = pneg %p222
        // Predicated region
        $region175: #{tpu_custom_call.1} parent=151 // pred_check
          _
        $region176: #{tpu_custom_call.1} parent=151 // pred_check_branch
          %238 = sbr.rel (%p222) target = $region178
        $region177: #{tpu_custom_call.1} parent=151 // pred_region
          %s239 = sand.u32 8, 7
        $region178: #{tpu_custom_call.1} parent=151 // pred_fallthru
          _
      $region152: #{tpu_custom_call.1} parent=11 // pred_fallthru
        _
      // Predicated region
      $region153: #{tpu_custom_call.1} parent=11 // pred_check
        %p206 = pneg %p202
      $region154: #{tpu_custom_call.1} parent=11 // pred_check_branch
        %208 = sbr.rel (%p206) target = $region156
      $region155: #{tpu_custom_call.1} parent=11 // pred_region
        %s209 = sshll.u32 1, 8
        %s210 = ssub.s32 %s209, 1
        loop: start=0, step=1, limit=1
        $region157: #{tpu_custom_call.1} parent=155 // loop_pre_header
          _
        $region158: #{tpu_custom_call.1} parent=155 // loop_header
          %s212 = sphi 0, %s216
          %p213 = scmp.ge.s32.totalorder %s212, 1
          %s217 = sphi %s198, %s198
          %s218 = sphi %s199, %s199
        $region159: #{tpu_custom_call.1} parent=155 // loop_header_branch
          %215 = sbr.rel (%p213) target = $region163
        $region160: #{tpu_custom_call.1} parent=155 // loop_body
          %v219 = vld [vmem:[%s217] sm:%s210]
          %220 = vst [vmem:[%s218] sm:%s210] %v219
        $region161: #{tpu_custom_call.1} parent=155 // loop_footer
          %s216 = sadd.s32 1, %s212
        $region162: #{tpu_custom_call.1} parent=155 // loop_footer_branch
          %211 = sbr.rel target = $region158
        $region163: #{tpu_custom_call.1} parent=155 // loop_exit
          _
      $region156: #{tpu_custom_call.1} parent=11 // pred_fallthru
        _
      // Predicated region
      $region179: #{tpu_custom_call.1} parent=11 // pred_check
        _
      $region180: #{tpu_custom_call.1} parent=11 // pred_check_branch
        %242 = sbr.rel (0) target = $region182
      $region181: #{tpu_custom_call.1} parent=11 // pred_region
        %243 = vsyncadd %s200, 128
      $region182: #{tpu_custom_call.1} parent=11 // pred_fallthru
        _
      %s244 = smul.u32 8, 1
      %s245 = sshll.u32 %s244, 4
      %246 = dma.done [#allocation2], %s245
      %s247 = sshll.u32 %s244, 4
      %248 = dma.done %s63, %s247
      %s249 = sshll.u32 %s244, 4
      %250 = dma.done %s108, %s249
      %s251 = sshll.u32 %s244, 4
      %252 = dma.done %s154, %s251
      %s253 = sshll.u32 %s244, 4
      %254 = dma.done %s200, %s253
    $region12: #{tpu_custom_call.1} parent=5 // pred_fallthru
      _
    %p255 = scmp.eq.s32.totalorder %s8, 1
    // Predicated region
    $region183: #{tpu_custom_call.1} parent=5 // pred_check
      %p256 = pneg %p255
    $region184: #{tpu_custom_call.1} parent=5 // pred_check_branch
      %258 = sbr.rel (%p256) target = $region186
    $region185: #{tpu_custom_call.1} parent=5 // pred_region
      %s259 = scalar_lea.vmem %s0, 16
      %s260 = scalar_lea.vmem %s2, 16
      %p262 = scmp.lt.u32.totalorder 8, 8
      %p263 = pneg %p262
      // Predicated region
      $region187: #{tpu_custom_call.1} parent=185 // pred_check
        _
      $region188: #{tpu_custom_call.1} parent=185 // pred_check_branch
        %265 = sbr.rel (%p262) target = $region190
      $region189: #{tpu_custom_call.1} parent=185 // pred_region
        %s281 = sand.u32 8, 7
        %p282 = scmp.eq.s32.totalorder %s281, 0
        // Predicated region
        $region202: #{tpu_custom_call.1} parent=189 // pred_check
          %p283 = pneg %p282
        $region203: #{tpu_custom_call.1} parent=189 // pred_check_branch
          %285 = sbr.rel (%p283) target = $region205
        $region204: #{tpu_custom_call.1} parent=189 // pred_region
          loop: start=0, step=1, limit=1
          $region206: #{tpu_custom_call.1} parent=204 // loop_pre_header
            _
          $region207: #{tpu_custom_call.1} parent=204 // loop_header
            %s287 = sphi 0, %s291
            %p288 = scmp.ge.s32.totalorder %s287, 1
            %s292 = sphi %s259, %s259
            %s293 = sphi %s260, %s260
          $region208: #{tpu_custom_call.1} parent=204 // loop_header_branch
            %290 = sbr.rel (%p288) target = $region212
          $region209: #{tpu_custom_call.1} parent=204 // loop_body
            %v294 = vld [vmem:[%s292] sm:$0xff]
            %295 = vst [vmem:[%s293] sm:$0xff] %v294
          $region210: #{tpu_custom_call.1} parent=204 // loop_footer
            %s291 = sadd.s32 1, %s287
          $region211: #{tpu_custom_call.1} parent=204 // loop_footer_branch
            %286 = sbr.rel target = $region207
          $region212: #{tpu_custom_call.1} parent=204 // loop_exit
            _
        $region205: #{tpu_custom_call.1} parent=189 // pred_fallthru
          _
        %p296 = pneg %p282
        // Predicated region
        $region213: #{tpu_custom_call.1} parent=189 // pred_check
          _
        $region214: #{tpu_custom_call.1} parent=189 // pred_check_branch
          %298 = sbr.rel (%p282) target = $region216
        $region215: #{tpu_custom_call.1} parent=189 // pred_region
          %s299 = sand.u32 8, 7
        $region216: #{tpu_custom_call.1} parent=189 // pred_fallthru
          _
      $region190: #{tpu_custom_call.1} parent=185 // pred_fallthru
        _
      // Predicated region
      $region191: #{tpu_custom_call.1} parent=185 // pred_check
        %p266 = pneg %p262
      $region192: #{tpu_custom_call.1} parent=185 // pred_check_branch
        %268 = sbr.rel (%p266) target = $region194
      $region193: #{tpu_custom_call.1} parent=185 // pred_region
        %s269 = sshll.u32 1, 8
        %s270 = ssub.s32 %s269, 1
        loop: start=0, step=1, limit=1
        $region195: #{tpu_custom_call.1} parent=193 // loop_pre_header
          _
        $region196: #{tpu_custom_call.1} parent=193 // loop_header
          %s272 = sphi 0, %s276
          %p273 = scmp.ge.s32.totalorder %s272, 1
          %s277 = sphi %s259, %s259
          %s278 = sphi %s260, %s260
        $region197: #{tpu_custom_call.1} parent=193 // loop_header_branch
          %275 = sbr.rel (%p273) target = $region201
        $region198: #{tpu_custom_call.1} parent=193 // loop_body
          %v279 = vld [vmem:[%s277] sm:%s270]
          %280 = vst [vmem:[%s278] sm:%s270] %v279
        $region199: #{tpu_custom_call.1} parent=193 // loop_footer
          %s276 = sadd.s32 1, %s272
        $region200: #{tpu_custom_call.1} parent=193 // loop_footer_branch
          %271 = sbr.rel target = $region196
        $region201: #{tpu_custom_call.1} parent=193 // loop_exit
          _
      $region194: #{tpu_custom_call.1} parent=185 // pred_fallthru
        _
      // Predicated region
      $region217: #{tpu_custom_call.1} parent=185 // pred_check
        _
      $region218: #{tpu_custom_call.1} parent=185 // pred_check_branch
        %302 = sbr.rel (0) target = $region220
      $region219: #{tpu_custom_call.1} parent=185 // pred_region
        %303 = vsyncadd [#allocation2], 128
      $region220: #{tpu_custom_call.1} parent=185 // pred_fallthru
        _
      %s304 = scalar_lea.vmem %s1, 24
      %s305 = scalar_lea.vmem %s2, 48
      %s306 = scalar_lea.sflag [#allocation2], 1
      %p308 = scmp.lt.u32.totalorder 8, 8
      %p309 = pneg %p308
      // Predicated region
      $region221: #{tpu_custom_call.1} parent=185 // pred_check
        _
      $region222: #{tpu_custom_call.1} parent=185 // pred_check_branch
        %311 = sbr.rel (%p308) target = $region224
      $region223: #{tpu_custom_call.1} parent=185 // pred_region
        %s327 = sand.u32 8, 7
        %p328 = scmp.eq.s32.totalorder %s327, 0
        // Predicated region
        $region236: #{tpu_custom_call.1} parent=223 // pred_check
          %p329 = pneg %p328
        $region237: #{tpu_custom_call.1} parent=223 // pred_check_branch
          %331 = sbr.rel (%p329) target = $region239
        $region238: #{tpu_custom_call.1} parent=223 // pred_region
          loop: start=0, step=1, limit=1
          $region240: #{tpu_custom_call.1} parent=238 // loop_pre_header
            _
          $region241: #{tpu_custom_call.1} parent=238 // loop_header
            %s333 = sphi 0, %s337
            %p334 = scmp.ge.s32.totalorder %s333, 1
            %s338 = sphi %s304, %s304
            %s339 = sphi %s305, %s305
          $region242: #{tpu_custom_call.1} parent=238 // loop_header_branch
            %336 = sbr.rel (%p334) target = $region246
          $region243: #{tpu_custom_call.1} parent=238 // loop_body
            %v340 = vld [vmem:[%s338] sm:$0xff]
            %341 = vst [vmem:[%s339] sm:$0xff] %v340
          $region244: #{tpu_custom_call.1} parent=238 // loop_footer
            %s337 = sadd.s32 1, %s333
          $region245: #{tpu_custom_call.1} parent=238 // loop_footer_branch
            %332 = sbr.rel target = $region241
          $region246: #{tpu_custom_call.1} parent=238 // loop_exit
            _
        $region239: #{tpu_custom_call.1} parent=223 // pred_fallthru
          _
        %p342 = pneg %p328
        // Predicated region
        $region247: #{tpu_custom_call.1} parent=223 // pred_check
          _
        $region248: #{tpu_custom_call.1} parent=223 // pred_check_branch
          %344 = sbr.rel (%p328) target = $region250
        $region249: #{tpu_custom_call.1} parent=223 // pred_region
          %s345 = sand.u32 8, 7
        $region250: #{tpu_custom_call.1} parent=223 // pred_fallthru
          _
      $region224: #{tpu_custom_call.1} parent=185 // pred_fallthru
        _
      // Predicated region
      $region225: #{tpu_custom_call.1} parent=185 // pred_check
        %p312 = pneg %p308
      $region226: #{tpu_custom_call.1} parent=185 // pred_check_branch
        %314 = sbr.rel (%p312) target = $region228
      $region227: #{tpu_custom_call.1} parent=185 // pred_region
        %s315 = sshll.u32 1, 8
        %s316 = ssub.s32 %s315, 1
        loop: start=0, step=1, limit=1
        $region229: #{tpu_custom_call.1} parent=227 // loop_pre_header
          _
        $region230: #{tpu_custom_call.1} parent=227 // loop_header
          %s318 = sphi 0, %s322
          %p319 = scmp.ge.s32.totalorder %s318, 1
          %s323 = sphi %s304, %s304
          %s324 = sphi %s305, %s305
        $region231: #{tpu_custom_call.1} parent=227 // loop_header_branch
          %321 = sbr.rel (%p319) target = $region235
        $region232: #{tpu_custom_call.1} parent=227 // loop_body
          %v325 = vld [vmem:[%s323] sm:%s316]
          %326 = vst [vmem:[%s324] sm:%s316] %v325
        $region233: #{tpu_custom_call.1} parent=227 // loop_footer
          %s322 = sadd.s32 1, %s318
        $region234: #{tpu_custom_call.1} parent=227 // loop_footer_branch
          %317 = sbr.rel target = $region230
        $region235: #{tpu_custom_call.1} parent=227 // loop_exit
          _
      $region228: #{tpu_custom_call.1} parent=185 // pred_fallthru
        _
      // Predicated region
      $region251: #{tpu_custom_call.1} parent=185 // pred_check
        _
      $region252: #{tpu_custom_call.1} parent=185 // pred_check_branch
        %348 = sbr.rel (0) target = $region254
      $region253: #{tpu_custom_call.1} parent=185 // pred_region
        %349 = vsyncadd %s306, 128
      $region254: #{tpu_custom_call.1} parent=185 // pred_fallthru
        _
      %s350 = scalar_lea.vmem %s1, 32
      %s351 = scalar_lea.vmem %s2, 56
      %s352 = scalar_lea.sflag [#allocation2], 2
      %p354 = scmp.lt.u32.totalorder 8, 8
      %p355 = pneg %p354
      // Predicated region
      $region255: #{tpu_custom_call.1} parent=185 // pred_check
        _
      $region256: #{tpu_custom_call.1} parent=185 // pred_check_branch
        %357 = sbr.rel (%p354) target = $region258
      $region257: #{tpu_custom_call.1} parent=185 // pred_region
        %s373 = sand.u32 8, 7
        %p374 = scmp.eq.s32.totalorder %s373, 0
        // Predicated region
        $region270: #{tpu_custom_call.1} parent=257 // pred_check
          %p375 = pneg %p374
        $region271: #{tpu_custom_call.1} parent=257 // pred_check_branch
          %377 = sbr.rel (%p375) target = $region273
        $region272: #{tpu_custom_call.1} parent=257 // pred_region
          loop: start=0, step=1, limit=1
          $region274: #{tpu_custom_call.1} parent=272 // loop_pre_header
            _
          $region275: #{tpu_custom_call.1} parent=272 // loop_header
            %s379 = sphi 0, %s383
            %p380 = scmp.ge.s32.totalorder %s379, 1
            %s384 = sphi %s350, %s350
            %s385 = sphi %s351, %s351
          $region276: #{tpu_custom_call.1} parent=272 // loop_header_branch
            %382 = sbr.rel (%p380) target = $region280
          $region277: #{tpu_custom_call.1} parent=272 // loop_body
            %v386 = vld [vmem:[%s384] sm:$0xff]
            %387 = vst [vmem:[%s385] sm:$0xff] %v386
          $region278: #{tpu_custom_call.1} parent=272 // loop_footer
            %s383 = sadd.s32 1, %s379
          $region279: #{tpu_custom_call.1} parent=272 // loop_footer_branch
            %378 = sbr.rel target = $region275
          $region280: #{tpu_custom_call.1} parent=272 // loop_exit
            _
        $region273: #{tpu_custom_call.1} parent=257 // pred_fallthru
          _
        %p388 = pneg %p374
        // Predicated region
        $region281: #{tpu_custom_call.1} parent=257 // pred_check
          _
        $region282: #{tpu_custom_call.1} parent=257 // pred_check_branch
          %390 = sbr.rel (%p374) target = $region284
        $region283: #{tpu_custom_call.1} parent=257 // pred_region
          %s391 = sand.u32 8, 7
        $region284: #{tpu_custom_call.1} parent=257 // pred_fallthru
          _
      $region258: #{tpu_custom_call.1} parent=185 // pred_fallthru
        _
      // Predicated region
      $region259: #{tpu_custom_call.1} parent=185 // pred_check
        %p358 = pneg %p354
      $region260: #{tpu_custom_call.1} parent=185 // pred_check_branch
        %360 = sbr.rel (%p358) target = $region262
      $region261: #{tpu_custom_call.1} parent=185 // pred_region
        %s361 = sshll.u32 1, 8
        %s362 = ssub.s32 %s361, 1
        loop: start=0, step=1, limit=1
        $region263: #{tpu_custom_call.1} parent=261 // loop_pre_header
          _
        $region264: #{tpu_custom_call.1} parent=261 // loop_header
          %s364 = sphi 0, %s368
          %p365 = scmp.ge.s32.totalorder %s364, 1
          %s369 = sphi %s350, %s350
          %s370 = sphi %s351, %s351
        $region265: #{tpu_custom_call.1} parent=261 // loop_header_branch
          %367 = sbr.rel (%p365) target = $region269
        $region266: #{tpu_custom_call.1} parent=261 // loop_body
          %v371 = vld [vmem:[%s369] sm:%s362]
          %372 = vst [vmem:[%s370] sm:%s362] %v371
        $region267: #{tpu_custom_call.1} parent=261 // loop_footer
          %s368 = sadd.s32 1, %s364
        $region268: #{tpu_custom_call.1} parent=261 // loop_footer_branch
          %363 = sbr.rel target = $region264
        $region269: #{tpu_custom_call.1} parent=261 // loop_exit
          _
      $region262: #{tpu_custom_call.1} parent=185 // pred_fallthru
        _
      // Predicated region
      $region285: #{tpu_custom_call.1} parent=185 // pred_check
        _
      $region286: #{tpu_custom_call.1} parent=185 // pred_check_branch
        %394 = sbr.rel (0) target = $region288
      $region287: #{tpu_custom_call.1} parent=185 // pred_region
        %395 = vsyncadd %s352, 128
      $region288: #{tpu_custom_call.1} parent=185 // pred_fallthru
        _
      %s396 = smul.u32 8, 1
      %s397 = sshll.u32 %s396, 4
      %398 = dma.done [#allocation2], %s397
      %s399 = sshll.u32 %s396, 4
      %400 = dma.done %s306, %s399
      %s401 = sshll.u32 %s396, 4
      %402 = dma.done %s352, %s401
    $region186: #{tpu_custom_call.1} parent=5 // pred_fallthru
      _
  $region6: #{tpu_custom_call.1} parent=0 // loop_footer
    %s12 = sadd.s32 1, %s8
  $region7: #{tpu_custom_call.1} parent=0 // loop_footer_branch
    %7 = sbr.rel target = $region3
  $region8: #{tpu_custom_call.1} parent=0 // loop_exit
    _
  %403 = vsyncmov [#allocation2]
  %s404 = vpop.sfrf %403
  %p405 = scmp.eq.s32.totalorder %s404, 0
  %p406 = pneg %p405
  %408 = shalt.err (%p406)
  %s409 = scalar_lea.sflag [#allocation2], 1
  %410 = vsyncmov %s409
  %s411 = vpop.sfrf %410
  %p412 = scmp.eq.s32.totalorder %s411, 0
  %p413 = pneg %p412
  %415 = shalt.err (%p413)
  %s416 = scalar_lea.sflag [#allocation2], 2
  %417 = vsyncmov %s416
  %s418 = vpop.sfrf %417
  %p419 = scmp.eq.s32.totalorder %s418, 0
  %p420 = pneg %p419
  %422 = shalt.err (%p420)
  %s423 = scalar_lea.sflag [#allocation2], 3
  %424 = vsyncmov %s423
  %s425 = vpop.sfrf %424
  %p426 = scmp.eq.s32.totalorder %s425, 0
  %p427 = pneg %p426
  %429 = shalt.err (%p427)
  %s430 = scalar_lea.sflag [#allocation2], 4
  %431 = vsyncmov %s430
  %s432 = vpop.sfrf %431
  %p433 = scmp.eq.s32.totalorder %s432, 0
  %p434 = pneg %p433
  %436 = shalt.err (%p434)

</llo_original>
